<compile_context>
chip_gen: v5e
topology: v5e:2x2
jax: 0.10.0
libtpu: 0.0.40
codegen_flags: <defaults>
</compile_context>

<pallas_src>
import math

import jax
import jax.numpy as jnp
from jax.experimental import pallas as pl
from jax.experimental.pallas import tpu as pltpu

# ----------------------------- configuration --------------------------------
DIM_INPUT = 8          # F
DIM_HIDDEN = 32        # H
NUM_BLOCKS = 2         # residual blocks in the MADE conditioner
BATCH = 16


def _softplus(v):
    # matches torch.nn.functional.softplus (beta=1, threshold=20)
    return jnp.where(v > 20.0, v, jnp.log(1.0 + jnp.exp(jnp.minimum(v, 20.0))))


# =============================================================================
# Fused kernel: MADE conditioner + elementwise affine + logabsdet reduction.
#   x_ref      : (TB, F)
#   w_in_ref   : (F, H)           initial masked linear (mask pre-applied)
#   w_hid_ref  : (2*NUM_BLOCKS, H, H)  residual-block masked linears (stacked)
#   w_scale_ref: (H, F)           final masked linear, scale half
#   w_shift_ref: (H, F)           final masked linear, shift half
#   b_hid_ref  : (1+2*NUM_BLOCKS, 1, H) biases [b0, b1a, b1b, b2a, b2b]
#   b_out_ref  : (2, 1, F)        biases [b_scale, b_shift]
# =============================================================================
def maf_affine_kernel(x_ref, w_in_ref, w_hid_ref, w_scale_ref, w_shift_ref,
                      b_hid_ref, b_out_ref, y_ref, lad_ref):
    x = x_ref[...]                                                   # (TB, F)

    # --- MADE conditioner (masked ResidualNet; masks baked into weights) ----
    h = jnp.dot(x, w_in_ref[...], preferred_element_type=jnp.float32)
    h = h + b_hid_ref[0]                                             # (TB, H)

    for blk in range(NUM_BLOCKS):                                    # unrolled
        wa = w_hid_ref[2 * blk]                                      # (H, H)
        wb = w_hid_ref[2 * blk + 1]                                  # (H, H)
        ba = b_hid_ref[1 + 2 * blk]                                  # (1, H)
        bb = b_hid_ref[2 + 2 * blk]                                  # (1, H)
        t = jnp.maximum(h, 0.0)
        t = jnp.dot(t, wa, preferred_element_type=jnp.float32) + ba
        t = jnp.maximum(t, 0.0)
        # dropout_probability=0.0 -> identity; use_batch_norm=False
        t = jnp.dot(t, wb, preferred_element_type=jnp.float32) + bb
        h = h + t

    us = jnp.dot(h, w_scale_ref[...], preferred_element_type=jnp.float32)
    us = us + b_out_ref[0]                                           # (TB, F)
    sh = jnp.dot(h, w_shift_ref[...], preferred_element_type=jnp.float32)
    sh = sh + b_out_ref[1]                                           # (TB, F)

    # --- elementwise affine transform + log|det| ----------------------------
    scale = _softplus(us) + 1e-3
    y_ref[...] = scale * x + sh
    lad_ref[...] = jnp.sum(jnp.log(scale), axis=-1, keepdims=True)   # (TB, 1)


def maf_affine_forward(x, params, *, block_batch=None):
    """Forward pass of _MAFAffine: returns (outputs, logabsdet)."""
    B, F = x.shape
    assert F == DIM_INPUT
    if block_batch is None:
        if B % 128 == 0:
            block_batch = 128
        elif B % 8 == 0:
            block_batch = 8
        else:
            block_batch = B
    assert B % block_batch == 0
    grid = (B // block_batch,)

    weights = (params["w_in"], params["w_hid"], params["w_scale"],
               params["w_shift"], params["b_hid"], params["b_out"])

    def _const_zero(ndim):
        return lambda i: (0,) * ndim

    in_specs = [pl.BlockSpec((block_batch, F), lambda i: (i, 0))]
    for w in weights:
        in_specs.append(pl.BlockSpec(w.shape, _const_zero(w.ndim)))

    out_shape = (jax.ShapeDtypeStruct((B, F), jnp.float32),
                 jax.ShapeDtypeStruct((B, 1), jnp.float32))
    out_specs = (pl.BlockSpec((block_batch, F), lambda i: (i, 0)),
                 pl.BlockSpec((block_batch, 1), lambda i: (i, 0)))

    y, lad = pl.pallas_call(
        maf_affine_kernel,
        out_shape=out_shape,
        grid=grid,
        in_specs=in_specs,
        out_specs=out_specs,
        compiler_params=pltpu.CompilerParams(
            dimension_semantics=("parallel",)),
    )(x, *weights)
    return y, lad[:, 0]


# =============================================================================
# Parameter construction: MADE degrees/masks (nflows), PyTorch-Linear-style
# init, residual-block second linear tiny init (zero_initialization=True).
# Masks are applied to the weights here (they are constant buffers), so the
# kernel only does dense matmuls.
# =============================================================================
def _made_masks(F, H):
    deg_in = jnp.arange(1, F + 1)                      # input degrees 1..F
    deg_h = jnp.arange(H) % (F - 1) + 1                # hidden degrees
    mask_in = (deg_h[None, :] >= deg_in[:, None]).astype(jnp.float32)   # (F,H)
    mask_hh = (deg_h[None, :] >= deg_h[:, None]).astype(jnp.float32)    # (H,H)
    mask_out = (deg_in[None, :] > deg_h[:, None]).astype(jnp.float32)   # (H,F)
    return mask_in, mask_hh, mask_out


def init_params(key):
    F, H = DIM_INPUT, DIM_HIDDEN
    mask_in, mask_hh, mask_out = _made_masks(F, H)

    def unif(k, shape, bound):
        return jax.random.uniform(k, shape, jnp.float32, -bound, bound)

    ks = jax.random.split(key, 2 + 4 * NUM_BLOCKS + 4)
    bF, bH = 1.0 / math.sqrt(F), 1.0 / math.sqrt(H)

    w_in = unif(ks[0], (F, H), bF) * mask_in
    b0 = unif(ks[1], (1, H), bF)

    hidden_ws, hidden_bs = [], []
    ki = 2
    for _ in range(NUM_BLOCKS):
        wa = unif(ks[ki], (H, H), bH) * mask_hh
        ba = unif(ks[ki + 1], (1, H), bH)
        wb = unif(ks[ki + 2], (H, H), 1e-3) * mask_hh   # zero_initialization
        bb = unif(ks[ki + 3], (1, H), 1e-3)
        hidden_ws += [wa, wb]
        hidden_bs += [ba, bb]
        ki += 4

    w_scale = unif(ks[ki], (H, F), bH) * mask_out
    b_scale = unif(ks[ki + 1], (1, F), bH)
    w_shift = unif(ks[ki + 2], (H, F), bH) * mask_out
    b_shift = unif(ks[ki + 3], (1, F), bH)

    return {
        "w_in": w_in,                                     # (F, H)
        "w_hid": jnp.stack(hidden_ws, axis=0),            # (2*NB, H, H)
        "w_scale": w_scale,                               # (H, F)
        "w_shift": w_shift,                               # (H, F)
        "b_hid": jnp.stack([b0] + hidden_bs, axis=0),     # (1+2*NB, 1, H)
        "b_out": jnp.stack([b_scale, b_shift], axis=0),   # (2, 1, F)
    }


# =============================================================================
# Pure-JAX reference (mirrors nflows MaskedAffineAutoregressiveTransform).
# =============================================================================
def _ref_forward(x, p):
    h = x @ p["w_in"] + p["b_hid"][0]
    for blk in range(NUM_BLOCKS):
        t = jnp.maximum(h, 0.0)
        t = t @ p["w_hid"][2 * blk] + p["b_hid"][1 + 2 * blk]
        t = jnp.maximum(t, 0.0)
        t = t @ p["w_hid"][2 * blk + 1] + p["b_hid"][2 + 2 * blk]
        h = h + t
    us = h @ p["w_scale"] + p["b_out"][0]
    sh = h @ p["w_shift"] + p["b_out"][1]
    scale = jax.nn.softplus(us) + 1e-3
    y = scale * x + sh
    lad = jnp.sum(jnp.log(scale), axis=-1)
    return y, lad


# TODO(synk): inverse() path (sequential feature-by-feature autoregressive
# inversion) not implemented; only forward() was requested.

if __name__ == "__main__":
    key = jax.random.PRNGKey(0)
    k_x, k_p = jax.random.split(key)
    x = jax.random.normal(k_x, (BATCH, DIM_INPUT), jnp.float32)
    params = init_params(k_p)

    y, logabsdet = maf_affine_forward(x, params)
    y = jax.block_until_ready(y)
    logabsdet = jax.block_until_ready(logabsdet)

    ref_y, ref_lad = _ref_forward(x, params)
    assert y.shape == (BATCH, DIM_INPUT) and logabsdet.shape == (BATCH,)
    assert jnp.allclose(y, ref_y, rtol=1e-4, atol=1e-4)
    assert jnp.allclose(logabsdet, ref_lad, rtol=1e-4, atol=1e-4)

    print("KERNEL_OK")
</pallas_src>

<mosaic_0001>
module attributes {stable_mosaic.version = 11 : i64} {
  func.func @maf_affine_kernel(%arg0: i32, %arg1: memref<8x8xf32, #tpu.memory_space<vmem>>, %arg2: memref<8x32xf32, #tpu.memory_space<vmem>>, %arg3: memref<4x32x32xf32, #tpu.memory_space<vmem>>, %arg4: memref<32x8xf32, #tpu.memory_space<vmem>>, %arg5: memref<32x8xf32, #tpu.memory_space<vmem>>, %arg6: memref<5x1x32xf32, #tpu.memory_space<vmem>>, %arg7: memref<2x1x8xf32, #tpu.memory_space<vmem>>, %arg8: memref<8x8xf32, #tpu.memory_space<vmem>>, %arg9: memref<8x1xf32, #tpu.memory_space<vmem>>) attributes {dimension_semantics = [#tpu.dimension_semantics<parallel>], iteration_bounds = array<i64: 2>, scalar_prefetch = 0 : i64, scratch_operands = 0 : i64, tpu.core_type = #tpu.core_type<tc>, window_params = [{transform_indices = @transform_0, window_bounds = array<i64: 8, 8>}, {pipeline_mode = #tpu.pipeline_mode<synchronous>, transform_indices = @transform_1, window_bounds = array<i64: 8, 32>}, {pipeline_mode = #tpu.pipeline_mode<synchronous>, transform_indices = @transform_2, window_bounds = array<i64: 4, 32, 32>}, {pipeline_mode = #tpu.pipeline_mode<synchronous>, transform_indices = @transform_3, window_bounds = array<i64: 32, 8>}, {pipeline_mode = #tpu.pipeline_mode<synchronous>, transform_indices = @transform_4, window_bounds = array<i64: 32, 8>}, {pipeline_mode = #tpu.pipeline_mode<synchronous>, transform_indices = @transform_5, window_bounds = array<i64: 5, 1, 32>}, {pipeline_mode = #tpu.pipeline_mode<synchronous>, transform_indices = @transform_6, window_bounds = array<i64: 2, 1, 8>}, {transform_indices = @transform_7, window_bounds = array<i64: 8, 8>}, {transform_indices = @transform_8, window_bounds = array<i64: 8, 1>}]} {
    %c0 = arith.constant 0 : index
    %c0_0 = arith.constant 0 : index
    %0 = vector.load %arg1[%c0, %c0_0] : memref<8x8xf32, #tpu.memory_space<vmem>>, vector<8x8xf32>
    %c0_1 = arith.constant 0 : index
    %c0_2 = arith.constant 0 : index
    %1 = vector.load %arg2[%c0_1, %c0_2] : memref<8x32xf32, #tpu.memory_space<vmem>>, vector<8x32xf32>
    %cst = arith.constant dense<0.000000e+00> : vector<8x32xf32>
    %2 = tpu.matmul %0, %1, %cst {dimension_numbers = #tpu.dot_dimension_numbers<[1], [0], [0], [1], [0, 0, 1, 1], [], []>} : vector<8x8xf32>, vector<8x32xf32>, vector<8x32xf32> -> vector<8x32xf32>
    %c0_3 = arith.constant 0 : index
    %c0_4 = arith.constant 0 : index
    %c0_5 = arith.constant 0 : index
    %3 = vector.load %arg6[%c0_3, %c0_4, %c0_5] : memref<5x1x32xf32, #tpu.memory_space<vmem>>, vector<1x1x32xf32>
    %4 = vector.shape_cast %3 : vector<1x1x32xf32> to vector<1x32xf32>
    %5 = vector.broadcast %4 : vector<1x32xf32> to vector<8x32xf32>
    %6 = arith.addf %2, %5 : vector<8x32xf32>
    %c0_6 = arith.constant 0 : index
    %c0_7 = arith.constant 0 : index
    %c0_8 = arith.constant 0 : index
    %7 = vector.load %arg3[%c0_6, %c0_7, %c0_8] : memref<4x32x32xf32, #tpu.memory_space<vmem>>, vector<1x32x32xf32>
    %8 = vector.shape_cast %7 : vector<1x32x32xf32> to vector<32x32xf32>
    %c1 = arith.constant 1 : index
    %c0_9 = arith.constant 0 : index
    %c0_10 = arith.constant 0 : index
    %9 = vector.load %arg3[%c1, %c0_9, %c0_10] : memref<4x32x32xf32, #tpu.memory_space<vmem>>, vector<1x32x32xf32>
    %10 = vector.shape_cast %9 : vector<1x32x32xf32> to vector<32x32xf32>
    %c1_11 = arith.constant 1 : index
    %c0_12 = arith.constant 0 : index
    %c0_13 = arith.constant 0 : index
    %11 = vector.load %arg6[%c1_11, %c0_12, %c0_13] : memref<5x1x32xf32, #tpu.memory_space<vmem>>, vector<1x1x32xf32>
    %12 = vector.shape_cast %11 : vector<1x1x32xf32> to vector<1x32xf32>
    %c2 = arith.constant 2 : index
    %c0_14 = arith.constant 0 : index
    %c0_15 = arith.constant 0 : index
    %13 = vector.load %arg6[%c2, %c0_14, %c0_15] : memref<5x1x32xf32, #tpu.memory_space<vmem>>, vector<1x1x32xf32>
    %14 = vector.shape_cast %13 : vector<1x1x32xf32> to vector<1x32xf32>
    %cst_16 = arith.constant 0.000000e+00 : f32
    %15 = vector.broadcast %cst_16 : f32 to vector<8x32xf32>
    %16 = arith.maximumf %6, %15 : vector<8x32xf32>
    %cst_17 = arith.constant dense<0.000000e+00> : vector<8x32xf32>
    %17 = tpu.matmul %16, %8, %cst_17 {dimension_numbers = #tpu.dot_dimension_numbers<[1], [0], [0], [1], [0, 0, 1, 1], [], []>} : vector<8x32xf32>, vector<32x32xf32>, vector<8x32xf32> -> vector<8x32xf32>
    %18 = vector.broadcast %12 : vector<1x32xf32> to vector<8x32xf32>
    %19 = arith.addf %17, %18 : vector<8x32xf32>
    %cst_18 = arith.constant 0.000000e+00 : f32
    %20 = vector.broadcast %cst_18 : f32 to vector<8x32xf32>
    %21 = arith.maximumf %19, %20 : vector<8x32xf32>
    %cst_19 = arith.constant dense<0.000000e+00> : vector<8x32xf32>
    %22 = tpu.matmul %21, %10, %cst_19 {dimension_numbers = #tpu.dot_dimension_numbers<[1], [0], [0], [1], [0, 0, 1, 1], [], []>} : vector<8x32xf32>, vector<32x32xf32>, vector<8x32xf32> -> vector<8x32xf32>
    %23 = vector.broadcast %14 : vector<1x32xf32> to vector<8x32xf32>
    %24 = arith.addf %22, %23 : vector<8x32xf32>
    %25 = arith.addf %6, %24 : vector<8x32xf32>
    %c2_20 = arith.constant 2 : index
    %c0_21 = arith.constant 0 : index
    %c0_22 = arith.constant 0 : index
    %26 = vector.load %arg3[%c2_20, %c0_21, %c0_22] : memref<4x32x32xf32, #tpu.memory_space<vmem>>, vector<1x32x32xf32>
    %27 = vector.shape_cast %26 : vector<1x32x32xf32> to vector<32x32xf32>
    %c3 = arith.constant 3 : index
    %c0_23 = arith.constant 0 : index
    %c0_24 = arith.constant 0 : index
    %28 = vector.load %arg3[%c3, %c0_23, %c0_24] : memref<4x32x32xf32, #tpu.memory_space<vmem>>, vector<1x32x32xf32>
    %29 = vector.shape_cast %28 : vector<1x32x32xf32> to vector<32x32xf32>
    %c3_25 = arith.constant 3 : index
    %c0_26 = arith.constant 0 : index
    %c0_27 = arith.constant 0 : index
    %30 = vector.load %arg6[%c3_25, %c0_26, %c0_27] : memref<5x1x32xf32, #tpu.memory_space<vmem>>, vector<1x1x32xf32>
    %31 = vector.shape_cast %30 : vector<1x1x32xf32> to vector<1x32xf32>
    %c4 = arith.constant 4 : index
    %c0_28 = arith.constant 0 : index
    %c0_29 = arith.constant 0 : index
    %32 = vector.load %arg6[%c4, %c0_28, %c0_29] : memref<5x1x32xf32, #tpu.memory_space<vmem>>, vector<1x1x32xf32>
    %33 = vector.shape_cast %32 : vector<1x1x32xf32> to vector<1x32xf32>
    %cst_30 = arith.constant 0.000000e+00 : f32
    %34 = vector.broadcast %cst_30 : f32 to vector<8x32xf32>
    %35 = arith.maximumf %25, %34 : vector<8x32xf32>
    %cst_31 = arith.constant dense<0.000000e+00> : vector<8x32xf32>
    %36 = tpu.matmul %35, %27, %cst_31 {dimension_numbers = #tpu.dot_dimension_numbers<[1], [0], [0], [1], [0, 0, 1, 1], [], []>} : vector<8x32xf32>, vector<32x32xf32>, vector<8x32xf32> -> vector<8x32xf32>
    %37 = vector.broadcast %31 : vector<1x32xf32> to vector<8x32xf32>
    %38 = arith.addf %36, %37 : vector<8x32xf32>
    %cst_32 = arith.constant 0.000000e+00 : f32
    %39 = vector.broadcast %cst_32 : f32 to vector<8x32xf32>
    %40 = arith.maximumf %38, %39 : vector<8x32xf32>
    %cst_33 = arith.constant dense<0.000000e+00> : vector<8x32xf32>
    %41 = tpu.matmul %40, %29, %cst_33 {dimension_numbers = #tpu.dot_dimension_numbers<[1], [0], [0], [1], [0, 0, 1, 1], [], []>} : vector<8x32xf32>, vector<32x32xf32>, vector<8x32xf32> -> vector<8x32xf32>
    %42 = vector.broadcast %33 : vector<1x32xf32> to vector<8x32xf32>
    %43 = arith.addf %41, %42 : vector<8x32xf32>
    %44 = arith.addf %25, %43 : vector<8x32xf32>
    %c0_34 = arith.constant 0 : index
    %c0_35 = arith.constant 0 : index
    %45 = vector.load %arg4[%c0_34, %c0_35] : memref<32x8xf32, #tpu.memory_space<vmem>>, vector<32x8xf32>
    %cst_36 = arith.constant dense<0.000000e+00> : vector<8x8xf32>
    %46 = tpu.matmul %44, %45, %cst_36 {dimension_numbers = #tpu.dot_dimension_numbers<[1], [0], [0], [1], [0, 0, 1, 1], [], []>} : vector<8x32xf32>, vector<32x8xf32>, vector<8x8xf32> -> vector<8x8xf32>
    %c0_37 = arith.constant 0 : index
    %c0_38 = arith.constant 0 : index
    %c0_39 = arith.constant 0 : index
    %47 = vector.load %arg7[%c0_37, %c0_38, %c0_39] : memref<2x1x8xf32, #tpu.memory_space<vmem>>, vector<1x1x8xf32>
    %48 = vector.shape_cast %47 : vector<1x1x8xf32> to vector<1x8xf32>
    %49 = vector.broadcast %48 : vector<1x8xf32> to vector<8x8xf32>
    %50 = arith.addf %46, %49 : vector<8x8xf32>
    %c0_40 = arith.constant 0 : index
    %c0_41 = arith.constant 0 : index
    %51 = vector.load %arg5[%c0_40, %c0_41] : memref<32x8xf32, #tpu.memory_space<vmem>>, vector<32x8xf32>
    %cst_42 = arith.constant dense<0.000000e+00> : vector<8x8xf32>
    %52 = tpu.matmul %44, %51, %cst_42 {dimension_numbers = #tpu.dot_dimension_numbers<[1], [0], [0], [1], [0, 0, 1, 1], [], []>} : vector<8x32xf32>, vector<32x8xf32>, vector<8x8xf32> -> vector<8x8xf32>
    %c1_43 = arith.constant 1 : index
    %c0_44 = arith.constant 0 : index
    %c0_45 = arith.constant 0 : index
    %53 = vector.load %arg7[%c1_43, %c0_44, %c0_45] : memref<2x1x8xf32, #tpu.memory_space<vmem>>, vector<1x1x8xf32>
    %54 = vector.shape_cast %53 : vector<1x1x8xf32> to vector<1x8xf32>
    %55 = vector.broadcast %54 : vector<1x8xf32> to vector<8x8xf32>
    %56 = arith.addf %52, %55 : vector<8x8xf32>
    %cst_46 = arith.constant 2.000000e+01 : f32
    %57 = vector.broadcast %cst_46 : f32 to vector<8x8xf32>
    %58 = arith.cmpf ogt, %50, %57 : vector<8x8xf32>
    %cst_47 = arith.constant 2.000000e+01 : f32
    %59 = vector.broadcast %cst_47 : f32 to vector<8x8xf32>
    %60 = arith.minimumf %50, %59 : vector<8x8xf32>
    %61 = math.exp %60 : vector<8x8xf32>
    %cst_48 = arith.constant 1.000000e+00 : f32
    %62 = vector.broadcast %cst_48 : f32 to vector<8x8xf32>
    %63 = arith.addf %62, %61 : vector<8x8xf32>
    %64 = math.log %63 : vector<8x8xf32>
    %65 = arith.select %58, %50, %64 : vector<8x8xi1>, vector<8x8xf32>
    %cst_49 = arith.constant 1.000000e-03 : f32
    %66 = vector.broadcast %cst_49 : f32 to vector<8x8xf32>
    %67 = arith.addf %65, %66 : vector<8x8xf32>
    %68 = arith.mulf %67, %0 : vector<8x8xf32>
    %69 = arith.addf %68, %56 : vector<8x8xf32>
    %c0_50 = arith.constant 0 : index
    %c0_51 = arith.constant 0 : index
    %70 = vector.load %arg8[%c0_50, %c0_51] : memref<8x8xf32, #tpu.memory_space<vmem>>, vector<8x8xf32>
    tpu.vector_store %arg8[%c0_50, %c0_51], %69 {strides = array<i32>} : memref<8x8xf32, #tpu.memory_space<vmem>>, vector<8x8xf32>,
    %71 = math.log %67 : vector<8x8xf32>
    %cst_52 = arith.constant dense<0.000000e+00> : vector<8xf32>
    %72 = vector.multi_reduction <add>, %71, %cst_52 [1] : vector<8x8xf32> to vector<8xf32>
    %73 = vector.shape_cast %72 : vector<8xf32> to vector<8x1xf32>
    %c0_53 = arith.constant 0 : index
    %c0_54 = arith.constant 0 : index
    %74 = vector.load %arg9[%c0_53, %c0_54] : memref<8x1xf32, #tpu.memory_space<vmem>>, vector<8x1xf32>
    tpu.vector_store %arg9[%c0_53, %c0_54], %73 {strides = array<i32>} : memref<8x1xf32, #tpu.memory_space<vmem>>, vector<8x1xf32>,
    return
  }
  func.func @transform_0(%arg0: i32) -> (i32, i32) {
    %c0_i32 = arith.constant 0 : i32
    %c0_i32_0 = arith.constant 0 : i32
    return %arg0, %c0_i32 : i32, i32
  }
  func.func @transform_1(%arg0: i32) -> (i32, i32) {
    %c0_i32 = arith.constant 0 : i32
    %c0_i32_0 = arith.constant 0 : i32
    %c0_i32_1 = arith.constant 0 : i32
    return %c0_i32, %c0_i32_0 : i32, i32
  }
  func.func @transform_2(%arg0: i32) -> (i32, i32, i32) {
    %c0_i32 = arith.constant 0 : i32
    %c0_i32_0 = arith.constant 0 : i32
    %c0_i32_1 = arith.constant 0 : i32
    %c0_i32_2 = arith.constant 0 : i32
    return %c0_i32, %c0_i32_0, %c0_i32_1 : i32, i32, i32
  }
  func.func @transform_3(%arg0: i32) -> (i32, i32) {
    %c0_i32 = arith.constant 0 : i32
    %c0_i32_0 = arith.constant 0 : i32
    %c0_i32_1 = arith.constant 0 : i32
    return %c0_i32, %c0_i32_0 : i32, i32
  }
  func.func @transform_4(%arg0: i32) -> (i32, i32) {
    %c0_i32 = arith.constant 0 : i32
    %c0_i32_0 = arith.constant 0 : i32
    %c0_i32_1 = arith.constant 0 : i32
    return %c0_i32, %c0_i32_0 : i32, i32
  }
  func.func @transform_5(%arg0: i32) -> (i32, i32, i32) {
    %c0_i32 = arith.constant 0 : i32
    %c0_i32_0 = arith.constant 0 : i32
    %c0_i32_1 = arith.constant 0 : i32
    %c0_i32_2 = arith.constant 0 : i32
    return %c0_i32, %c0_i32_0, %c0_i32_1 : i32, i32, i32
  }
  func.func @transform_6(%arg0: i32) -> (i32, i32, i32) {
    %c0_i32 = arith.constant 0 : i32
    %c0_i32_0 = arith.constant 0 : i32
    %c0_i32_1 = arith.constant 0 : i32
    %c0_i32_2 = arith.constant 0 : i32
    return %c0_i32, %c0_i32_0, %c0_i32_1 : i32, i32, i32
  }
  func.func @transform_7(%arg0: i32) -> (i32, i32) {
    %c0_i32 = arith.constant 0 : i32
    %c0_i32_0 = arith.constant 0 : i32
    return %arg0, %c0_i32 : i32, i32
  }
  func.func @transform_8(%arg0: i32) -> (i32, i32) {
    %c0_i32 = arith.constant 0 : i32
    %c0_i32_0 = arith.constant 0 : i32
    return %arg0, %c0_i32 : i32, i32
  }
}

</mosaic_0001>

<llo_original>
// kernel: tpu_custom_call.1
$region0: #{tpu_custom_call.1}
  #allocation0 [shape = 'u32[]', space=smem, size = 0x4, offset = 0x4, fixed_abs, tag = 'smem constant byte address 0x4 - core index']
  #allocation1 [shape = 'u32[72,128]{1,0:T(1,128)}', space=vmem, size = 0x9000, scoped, tag = 'internal scratch']
  %s0 = inlined_call_operand.vmem [shape: f32[16,8], index: 0, kind: input, shape index: {}]
  %s1 = inlined_call_operand.vmem [shape: f32[8,32], index: 1, kind: input, shape index: {}]
  %s2 = inlined_call_operand.hbm [shape: f32[4,32,32], index: 2, kind: input, shape index: {}]
  %s3 = inlined_call_operand.vmem [shape: f32[32,8], index: 3, kind: input, shape index: {}]
  %s4 = inlined_call_operand.vmem [shape: f32[32,8], index: 4, kind: input, shape index: {}]
  %s5 = inlined_call_operand.vmem [shape: f32[5,1,32], index: 5, kind: input, shape index: {}]
  %s6 = inlined_call_operand.vmem [shape: f32[2,1,8], index: 6, kind: input, shape index: {}]
  %s7 = inlined_call_operand.vmem [shape: f32[16,8], index: 7, kind: output, shape index: {0}]
  %s8 = inlined_call_operand.vmem [shape: f32[16,1], index: 8, kind: output, shape index: {1}]
  %9 = xla_tuple %s7, %s8
  %s10 = sld [smem:[#allocation0]]
  $region73: #{tpu_custom_call.1} parent=0
    _
  %s12 = ssub.s32 1, %s10
  %s13 = scalar_select 0, %s12, %s10
  $region1: #{tpu_custom_call.1} parent=0
    #allocation2 [shape = 'u8[65536]{0}', space=vmem, size = 0x10000, scoped, tag = 'input window, operand 2, single buffered']
    #allocation3 [shape = 's32[2]{0}', space=sflag, size = 0x8, scoped, tag = 'scoped memory for tpu_custom_call.1']
    %14 = vsyncpa [#allocation3], 0
    loop: start=0, step=1, limit=4
    $region2: #{tpu_custom_call.1} parent=1 // loop_pre_header
      _
    $region3: #{tpu_custom_call.1} parent=1 // loop_header
      %s16 = sphi 0, %s20
      %p17 = scmp.ge.s32.totalorder %s16, 4
      %s26 = sphi 0, %s28
      %s29 = sphi 0, %s26
      %s30 = sphi 0, %s29
      %s46 = sphi 0, %s30
      %s50 = sphi 0, %s50
      %s52 = sphi 0, %s50
      %s53 = sphi 0, %s52
      %s67 = sphi 0, %s53
      %s71 = sphi 0, %s71
      %s73 = sphi 0, %s71
      %s74 = sphi 0, %s73
      %s88 = sphi 0, %s74
      %s92 = sphi 0, %s92
      %s94 = sphi 0, %s92
      %s95 = sphi 0, %s94
      %s109 = sphi 0, %s95
      %s113 = sphi 0, %s113
      %s115 = sphi 0, %s113
      %s116 = sphi 0, %s115
      %s130 = sphi 0, %s116
      %s134 = sphi 0, %s134
      %s136 = sphi 0, %s134
      %s137 = sphi 0, %s136
      %s151 = sphi 0, %s137
      %s155 = sphi 0, %s155
      %s157 = sphi 0, %s155
      %s158 = sphi 0, %s157
      %s172 = sphi 0, %s158
      %s178 = sphi 0, %s180
      %s181 = sphi 0, %s178
      %s182 = sphi 0, %s181
      %s198 = sphi 0, %s182
      %s204 = sphi 0, %s206
      %s207 = sphi 0, %s204
      %s208 = sphi 0, %s207
      %s224 = sphi 0, %s208
    $region4: #{tpu_custom_call.1} parent=1 // loop_header_branch
      %19 = sbr.rel (%p17) target = $region8
    $region5: #{tpu_custom_call.1} parent=1 // loop_body
      %s21 = ssub.s32 %s16, 1
      %s22 = ssub.s32 %s16, 2
      %s23 = sadd.s32 %s16, 1
      %s24 = ssub.s32 %s16, %s23
      %p25 = scmp.eq.s32.totalorder %s24, 0
      %s27 = sadd.s32 %s26, 1
      %s28 = scalar_select %p25, %s26, %s27
      %p31 = pneg %p25
      %p32 = scmp.eq.s32.totalorder %s16, 1
      %p33 = por %p31, %p32
      %p34 = scmp.ne.s32.totalorder %s26, %s29
      %p35 = scmp.eq.s32.totalorder %s16, 0
      %p36 = por %p34, %p35
      %p37 = scmp.ne.s32.totalorder %s26, %s29
      %p38 = scmp.eq.s32.totalorder %s21, 1
      %p39 = por %p37, %p38
      %p40 = scmp.ne.s32.totalorder %s29, %s30
      %p41 = scmp.eq.s32.totalorder %s21, 0
      %p42 = por %p40, %p41
      %p43 = scmp.ne.s32.totalorder %s29, %s30
      %p44 = scmp.eq.s32.totalorder %s22, 1
      %p45 = por %p43, %p44
      %p47 = scmp.ne.s32.totalorder %s30, %s46
      %p48 = scmp.eq.s32.totalorder %s22, 0
      %p49 = por %p47, %p48
      %s51 = sadd.s32 %s50, 1
      %p54 = scmp.eq.s32.totalorder %s16, 1
      %p55 = scmp.ne.s32.totalorder %s50, %s52
      %p56 = scmp.eq.s32.totalorder %s16, 0
      %p57 = por %p55, %p56
      %p58 = scmp.ne.s32.totalorder %s50, %s52
      %p59 = scmp.eq.s32.totalorder %s21, 1
      %p60 = por %p58, %p59
      %p61 = scmp.ne.s32.totalorder %s52, %s53
      %p62 = scmp.eq.s32.totalorder %s21, 0
      %p63 = por %p61, %p62
      %p64 = scmp.ne.s32.totalorder %s52, %s53
      %p65 = scmp.eq.s32.totalorder %s22, 1
      %p66 = por %p64, %p65
      %p68 = scmp.ne.s32.totalorder %s53, %s67
      %p69 = scmp.eq.s32.totalorder %s22, 0
      %p70 = por %p68, %p69
      %s72 = sadd.s32 %s71, 1
      %p75 = scmp.eq.s32.totalorder %s16, 1
      %p76 = scmp.ne.s32.totalorder %s71, %s73
      %p77 = scmp.eq.s32.totalorder %s16, 0
      %p78 = por %p76, %p77
      %p79 = scmp.ne.s32.totalorder %s71, %s73
      %p80 = scmp.eq.s32.totalorder %s21, 1
      %p81 = por %p79, %p80
      %p82 = scmp.ne.s32.totalorder %s73, %s74
      %p83 = scmp.eq.s32.totalorder %s21, 0
      %p84 = por %p82, %p83
      %p85 = scmp.ne.s32.totalorder %s73, %s74
      %p86 = scmp.eq.s32.totalorder %s22, 1
      %p87 = por %p85, %p86
      %p89 = scmp.ne.s32.totalorder %s74, %s88
      %p90 = scmp.eq.s32.totalorder %s22, 0
      %p91 = por %p89, %p90
      %s93 = sadd.s32 %s92, 1
      %p96 = scmp.eq.s32.totalorder %s16, 1
      %p97 = scmp.ne.s32.totalorder %s92, %s94
      %p98 = scmp.eq.s32.totalorder %s16, 0
      %p99 = por %p97, %p98
      %p100 = scmp.ne.s32.totalorder %s92, %s94
      %p101 = scmp.eq.s32.totalorder %s21, 1
      %p102 = por %p100, %p101
      %p103 = scmp.ne.s32.totalorder %s94, %s95
      %p104 = scmp.eq.s32.totalorder %s21, 0
      %p105 = por %p103, %p104
      %p106 = scmp.ne.s32.totalorder %s94, %s95
      %p107 = scmp.eq.s32.totalorder %s22, 1
      %p108 = por %p106, %p107
      %p110 = scmp.ne.s32.totalorder %s95, %s109
      %p111 = scmp.eq.s32.totalorder %s22, 0
      %p112 = por %p110, %p111
      %s114 = sadd.s32 %s113, 1
      %p117 = scmp.eq.s32.totalorder %s16, 1
      %p118 = scmp.ne.s32.totalorder %s113, %s115
      %p119 = scmp.eq.s32.totalorder %s16, 0
      %p120 = por %p118, %p119
      %p121 = scmp.ne.s32.totalorder %s113, %s115
      %p122 = scmp.eq.s32.totalorder %s21, 1
      %p123 = por %p121, %p122
      %p124 = scmp.ne.s32.totalorder %s115, %s116
      %p125 = scmp.eq.s32.totalorder %s21, 0
      %p126 = por %p124, %p125
      %p127 = scmp.ne.s32.totalorder %s115, %s116
      %p128 = scmp.eq.s32.totalorder %s22, 1
      %p129 = por %p127, %p128
      %p131 = scmp.ne.s32.totalorder %s116, %s130
      %p132 = scmp.eq.s32.totalorder %s22, 0
      %p133 = por %p131, %p132
      %s135 = sadd.s32 %s134, 1
      %p138 = scmp.eq.s32.totalorder %s16, 1
      %p139 = scmp.ne.s32.totalorder %s134, %s136
      %p140 = scmp.eq.s32.totalorder %s16, 0
      %p141 = por %p139, %p140
      %p142 = scmp.ne.s32.totalorder %s134, %s136
      %p143 = scmp.eq.s32.totalorder %s21, 1
      %p144 = por %p142, %p143
      %p145 = scmp.ne.s32.totalorder %s136, %s137
      %p146 = scmp.eq.s32.totalorder %s21, 0
      %p147 = por %p145, %p146
      %p148 = scmp.ne.s32.totalorder %s136, %s137
      %p149 = scmp.eq.s32.totalorder %s22, 1
      %p150 = por %p148, %p149
      %p152 = scmp.ne.s32.totalorder %s137, %s151
      %p153 = scmp.eq.s32.totalorder %s22, 0
      %p154 = por %p152, %p153
      %s156 = sadd.s32 %s155, 1
      %p159 = scmp.eq.s32.totalorder %s16, 1
      %p160 = scmp.ne.s32.totalorder %s155, %s157
      %p161 = scmp.eq.s32.totalorder %s16, 0
      %p162 = por %p160, %p161
      %p163 = scmp.ne.s32.totalorder %s155, %s157
      %p164 = scmp.eq.s32.totalorder %s21, 1
      %p165 = por %p163, %p164
      %p166 = scmp.ne.s32.totalorder %s157, %s158
      %p167 = scmp.eq.s32.totalorder %s21, 0
      %p168 = por %p166, %p167
      %p169 = scmp.ne.s32.totalorder %s157, %s158
      %p170 = scmp.eq.s32.totalorder %s22, 1
      %p171 = por %p169, %p170
      %p173 = scmp.ne.s32.totalorder %s158, %s172
      %p174 = scmp.eq.s32.totalorder %s22, 0
      %p175 = por %p173, %p174
      %s176 = ssub.s32 %s16, %s23
      %p177 = scmp.eq.s32.totalorder %s176, 0
      %s179 = sadd.s32 %s178, 1
      %s180 = scalar_select %p177, %s178, %s179
      %p183 = pneg %p177
      %p184 = scmp.eq.s32.totalorder %s16, 1
      %p185 = por %p183, %p184
      %p186 = scmp.ne.s32.totalorder %s178, %s181
      %p187 = scmp.eq.s32.totalorder %s16, 0
      %p188 = por %p186, %p187
      %p189 = scmp.ne.s32.totalorder %s178, %s181
      %p190 = scmp.eq.s32.totalorder %s21, 1
      %p191 = por %p189, %p190
      %p192 = scmp.ne.s32.totalorder %s181, %s182
      %p193 = scmp.eq.s32.totalorder %s21, 0
      %p194 = por %p192, %p193
      %p195 = scmp.ne.s32.totalorder %s181, %s182
      %p196 = scmp.eq.s32.totalorder %s22, 1
      %p197 = por %p195, %p196
      %p199 = scmp.ne.s32.totalorder %s182, %s198
      %p200 = scmp.eq.s32.totalorder %s22, 0
      %p201 = por %p199, %p200
      %s202 = ssub.s32 %s16, %s23
      %p203 = scmp.eq.s32.totalorder %s202, 0
      %s205 = sadd.s32 %s204, 1
      %s206 = scalar_select %p203, %s204, %s205
      %p209 = pneg %p203
      %p210 = scmp.eq.s32.totalorder %s16, 1
      %p211 = por %p209, %p210
      %p212 = scmp.ne.s32.totalorder %s204, %s207
      %p213 = scmp.eq.s32.totalorder %s16, 0
      %p214 = por %p212, %p213
      %p215 = scmp.ne.s32.totalorder %s204, %s207
      %p216 = scmp.eq.s32.totalorder %s21, 1
      %p217 = por %p215, %p216
      %p218 = scmp.ne.s32.totalorder %s207, %s208
      %p219 = scmp.eq.s32.totalorder %s21, 0
      %p220 = por %p218, %p219
      %p221 = scmp.ne.s32.totalorder %s207, %s208
      %p222 = scmp.eq.s32.totalorder %s22, 1
      %p223 = por %p221, %p222
      %p225 = scmp.ne.s32.totalorder %s208, %s224
      %p226 = scmp.eq.s32.totalorder %s22, 0
      %p227 = por %p225, %p226
      %p228 = scmp.le.s32.totalorder 1, %s16
      %p229 = scmp.lt.s32.totalorder %s16, 3
      %p230 = pnand %p228, %p229
      %p231 = pneg %p230
      // Predicated region
      $region9: #{tpu_custom_call.1} parent=5 // pred_check
        _
      $region10: #{tpu_custom_call.1} parent=5 // pred_check_branch
        %233 = sbr.rel (%p230) target = $region12
      $region11: #{tpu_custom_call.1} parent=5 // pred_region
        %s234 = ssub.s32 %s16, 1
        // Predicated region
        $region13: #{tpu_custom_call.1} parent=11 // pred_check
          %p235 = pneg %p63
        $region14: #{tpu_custom_call.1} parent=11 // pred_check_branch
          %237 = sbr.rel (%p235) target = $region16
        $region15: #{tpu_custom_call.1} parent=11 // pred_region
          _
        $region16: #{tpu_custom_call.1} parent=11 // pred_fallthru
          _
        // Predicated region
        $region17: #{tpu_custom_call.1} parent=11 // pred_check
          %p238 = pneg %p84
        $region18: #{tpu_custom_call.1} parent=11 // pred_check_branch
          %240 = sbr.rel (%p238) target = $region20
        $region19: #{tpu_custom_call.1} parent=11 // pred_region
          %242 = vsyncadd [#allocation3], 0
          %s243 = sshll.u32 %s2, 4
          %s244 = int_to_ptr.hbm [resolvable:$true] %s243
          %s245 = sshll.u32 [#allocation2], 4
          %s246 = int_to_ptr.vmem [resolvable:$true] %s245
          %251 = dma.hbm_to_vmem [thread:$0]  %s244, 2048, %s246, [#allocation3], 128, 128, 8
        $region20: #{tpu_custom_call.1} parent=11 // pred_fallthru
          _
        // Predicated region
        $region21: #{tpu_custom_call.1} parent=11 // pred_check
          %p252 = pneg %p105
        $region22: #{tpu_custom_call.1} parent=11 // pred_check_branch
          %254 = sbr.rel (%p252) target = $region24
        $region23: #{tpu_custom_call.1} parent=11 // pred_region
          _
        $region24: #{tpu_custom_call.1} parent=11 // pred_fallthru
          _
        // Predicated region
        $region25: #{tpu_custom_call.1} parent=11 // pred_check
          %p255 = pneg %p126
        $region26: #{tpu_custom_call.1} parent=11 // pred_check_branch
          %257 = sbr.rel (%p255) target = $region28
        $region27: #{tpu_custom_call.1} parent=11 // pred_region
          _
        $region28: #{tpu_custom_call.1} parent=11 // pred_fallthru
          _
        // Predicated region
        $region29: #{tpu_custom_call.1} parent=11 // pred_check
          %p258 = pneg %p147
        $region30: #{tpu_custom_call.1} parent=11 // pred_check_branch
          %260 = sbr.rel (%p258) target = $region32
        $region31: #{tpu_custom_call.1} parent=11 // pred_region
          _
        $region32: #{tpu_custom_call.1} parent=11 // pred_fallthru
          _
        // Predicated region
        $region33: #{tpu_custom_call.1} parent=11 // pred_check
          %p261 = pneg %p168
        $region34: #{tpu_custom_call.1} parent=11 // pred_check_branch
          %263 = sbr.rel (%p261) target = $region36
        $region35: #{tpu_custom_call.1} parent=11 // pred_region
          _
        $region36: #{tpu_custom_call.1} parent=11 // pred_fallthru
          _
      $region12: #{tpu_custom_call.1} parent=5 // pred_fallthru
        _
      %p264 = scmp.lt.s32.totalorder %s16, 2
      // Predicated region
      $region37: #{tpu_custom_call.1} parent=5 // pred_check
        %p265 = pneg %p264
      $region38: #{tpu_custom_call.1} parent=5 // pred_check_branch
        %267 = sbr.rel (%p265) target = $region40
      $region39: #{tpu_custom_call.1} parent=5 // pred_region
        // Predicated region
        $region41: #{tpu_custom_call.1} parent=39 // pred_check
          %p268 = pneg %p36
        $region42: #{tpu_custom_call.1} parent=39 // pred_check_branch
          %270 = sbr.rel (%p268) target = $region44
        $region43: #{tpu_custom_call.1} parent=39 // pred_region
          %p271 = scmp.lt.s32.totalorder %s16, 1
          %s272 = scalar_select %p271, %s16, 1
          %s273 = smul.addr %s272, 8
          %s274 = scalar_lea.vmem %s0, %s273
        $region44: #{tpu_custom_call.1} parent=39 // pred_fallthru
          _
      $region40: #{tpu_custom_call.1} parent=5 // pred_fallthru
        _
      %p275 = scmp.le.s32.totalorder 1, %s16
      %p276 = scmp.lt.s32.totalorder %s16, 3
      %p277 = pnand %p275, %p276
      %p278 = pneg %p277
      // Predicated region
      $region45: #{tpu_custom_call.1} parent=5 // pred_check
        _
      $region46: #{tpu_custom_call.1} parent=5 // pred_check_branch
        %280 = sbr.rel (%p277) target = $region48
      $region47: #{tpu_custom_call.1} parent=5 // pred_region
        %s281 = ssub.s32 %s16, 1
        // Predicated region
        $region49: #{tpu_custom_call.1} parent=47 // pred_check
          %p282 = pneg %p84
        $region50: #{tpu_custom_call.1} parent=47 // pred_check_branch
          %284 = sbr.rel (%p282) target = $region52
        $region51: #{tpu_custom_call.1} parent=47 // pred_region
          %286 = dma.done [#allocation3], 2048
        $region52: #{tpu_custom_call.1} parent=47 // pred_fallthru
          _
        %p287 = scmp.lt.s32.totalorder %s21, 1
        %s288 = scalar_select %p287, %s21, 1
        %s289 = smul.addr %s288, 8
        %s290 = scalar_lea.vmem %s0, %s289
        %p291 = pneg %p42
        %p292 = pneg %p39
        %p293 = pneg %p63
        %p294 = pneg %p60
        %p295 = pneg %p84
        %p296 = pneg %p81
        %p297 = pneg %p105
        %p298 = pneg %p102
        %p299 = pneg %p126
        %p300 = pneg %p123
        %p301 = pneg %p147
        %p302 = pneg %p144
        %p303 = pneg %p168
        %p304 = pneg %p165
        %p305 = pneg %p194
        %p306 = pneg %p191
        %p307 = scmp.lt.s32.totalorder %s21, 1
        %s308 = scalar_select %p307, %s21, 1
        %s309 = smul.addr %s308, 8
        %s310 = scalar_lea.vmem %s7, %s309
        %p311 = pneg %p220
        %p312 = pneg %p217
        %p313 = scmp.lt.s32.totalorder %s21, 1
        %s314 = scalar_select %p313, %s21, 1
        %s315 = smul.addr %s314, 8
        %s316 = scalar_lea.vmem %s8, %s315
        %p317 = scmp.lt.s32.totalorder %s21, 1
        %s318 = scalar_select %p317, %s21, 1
        %s319 = smul.addr %s318, 8
        %s320 = scalar_lea.vmem %s0, %s319
        %p321 = scmp.lt.s32.totalorder %s21, 1
        %s322 = scalar_select %p321, %s21, 1
        %s323 = smul.addr %s322, 8
        %s324 = scalar_lea.vmem %s7, %s323
        %p325 = scmp.lt.s32.totalorder %s21, 1
        %s326 = scalar_select %p325, %s21, 1
        %s327 = smul.addr %s326, 8
        %s328 = scalar_lea.vmem %s8, %s327
        %v329 = vld [vmem:[%s320] sm:$0xff]
        %v330 = vld [vmem:[%s1] sm:$0xff]
        %v331 = vld [vmem:[%s5] sm:$0x1]
        %v333 = vperm.slane %v331, 0
        %vm335 = vcmask 64512
        %v337 = vsel %vm335, %v329, 0
        %339 = vmatpush.msra.mxu0 0.0
        %340 = vmatpush.msra.mxu0 0.0
        %341 = vmatpush.msra.mxu0 0.0
        %342 = vmatpush.msra.mxu0 0.0
        %343 = vmatpush.msra.mxu0 0.0
        %344 = vmatpush.msra.mxu0 0.0
        %345 = vmatpush.msra.mxu0 0.0
        %346 = vmatpush.msra.mxu0 0.0
        %347 = vmatpush.msra.mxu0 0.0
        %348 = vmatpush.msra.mxu0 0.0
        %349 = vmatpush.msra.mxu0 0.0
        %350 = vmatpush.msra.mxu0 0.0
        %351 = vmatpush.msra.mxu0 0.0
        %352 = vmatpush.msra.mxu0 0.0
        %353 = vmatpush.msra.mxu0 0.0
        %354 = vmatpush.msra.mxu0 %v330
        %355 = vmatmul.f32.gmra.mxu0 %v337
        %v356 = vpop.f32.mrf.mxu0
        %v357 = vadd.f32 %v333, %v356
        %358 = vdwg.mxu0
        %v359 = vld [vmem:[#allocation2] sm:$0xff]
        %v360 = vld [vmem:[#allocation2 + $0x8] sm:$0xff]
        %v361 = vld [vmem:[#allocation2 + $0x10] sm:$0xff]
        %v362 = vld [vmem:[#allocation2 + $0x18] sm:$0xff]
        %s363 = scalar_lea.vmem [#allocation2], 32
        %v364 = vld [vmem:[%s363] sm:$0xff]
        %v365 = vld [vmem:[%s363 + $0x8] sm:$0xff]
        %v366 = vld [vmem:[%s363 + $0x10] sm:$0xff]
        %v367 = vld [vmem:[%s363 + $0x18] sm:$0xff]
        %s368 = scalar_lea.vmem %s5, 1
        %v369 = vld [vmem:[%s368] sm:$0x1]
        %s370 = scalar_lea.vmem %s5, 2
        %v371 = vld [vmem:[%s370] sm:$0x1]
        %v372 = vmax.f32 %v357, 0.0
        %v374 = vperm.slane %v369, 0
        %vm376 = vcmask 261120
        %v378 = vsel %vm376, %v372, 0
        %380 = vmatpush.msra.mxu0 0.0
        %381 = vmatpush.msra.mxu0 0.0
        %382 = vmatpush.msra.mxu0 0.0
        %383 = vmatpush.msra.mxu0 0.0
        %384 = vmatpush.msra.mxu0 0.0
        %385 = vmatpush.msra.mxu0 0.0
        %386 = vmatpush.msra.mxu0 0.0
        %387 = vmatpush.msra.mxu0 0.0
        %388 = vmatpush.msra.mxu0 0.0
        %389 = vmatpush.msra.mxu0 0.0
        %390 = vmatpush.msra.mxu0 0.0
        %391 = vmatpush.msra.mxu0 0.0
        %392 = vmatpush.msra.mxu0 %v362
        %393 = vmatpush.msra.mxu0 %v361
        %394 = vmatpush.msra.mxu0 %v360
        %395 = vmatpush.msra.mxu0 %v359
        %396 = vmatmul.f32.gmra.mxu0 %v378
        %v397 = vpop.f32.mrf.mxu0
        %v398 = vadd.f32 %v374, %v397
        %399 = vdwg.mxu0
        %v400 = vmax.f32 %v398, 0.0
        %v402 = vperm.slane %v371, 0
        %v405 = vsel %vm376, %v400, 0
        %407 = vmatpush.msra.mxu0 0.0
        %408 = vmatpush.msra.mxu0 0.0
        %409 = vmatpush.msra.mxu0 0.0
        %410 = vmatpush.msra.mxu0 0.0
        %411 = vmatpush.msra.mxu0 0.0
        %412 = vmatpush.msra.mxu0 0.0
        %413 = vmatpush.msra.mxu0 0.0
        %414 = vmatpush.msra.mxu0 0.0
        %415 = vmatpush.msra.mxu0 0.0
        %416 = vmatpush.msra.mxu0 0.0
        %417 = vmatpush.msra.mxu0 0.0
        %418 = vmatpush.msra.mxu0 0.0
        %419 = vmatpush.msra.mxu0 %v367
        %420 = vmatpush.msra.mxu0 %v366
        %421 = vmatpush.msra.mxu0 %v365
        %422 = vmatpush.msra.mxu0 %v364
        %423 = vmatmul.f32.gmra.mxu0 %v405
        %v424 = vpop.f32.mrf.mxu0
        %v425 = vadd.f32 %v402, %v424
        %426 = vdwg.mxu0
        %v427 = vadd.f32 %v357, %v425
        %s428 = scalar_lea.vmem [#allocation2], 64
        %v429 = vld [vmem:[%s428] sm:$0xff]
        %v430 = vld [vmem:[%s428 + $0x8] sm:$0xff]
        %v431 = vld [vmem:[%s428 + $0x10] sm:$0xff]
        %v432 = vld [vmem:[%s428 + $0x18] sm:$0xff]
        %s433 = scalar_lea.vmem [#allocation2], 96
        %v434 = vld [vmem:[%s433] sm:$0xff]
        %v435 = vld [vmem:[%s433 + $0x8] sm:$0xff]
        %v436 = vld [vmem:[%s433 + $0x10] sm:$0xff]
        %v437 = vld [vmem:[%s433 + $0x18] sm:$0xff]
        %s438 = scalar_lea.vmem %s5, 3
        %v439 = vld [vmem:[%s438] sm:$0x1]
        %s440 = scalar_lea.vmem %s5, 4
        %v441 = vld [vmem:[%s440] sm:$0x1]
        %v442 = vmax.f32 %v427, 0.0
        %v444 = vperm.slane %v439, 0
        %v447 = vsel %vm376, %v442, 0
        %449 = vmatpush.msra.mxu0 0.0
        %450 = vmatpush.msra.mxu0 0.0
        %451 = vmatpush.msra.mxu0 0.0
        %452 = vmatpush.msra.mxu0 0.0
        %453 = vmatpush.msra.mxu0 0.0
        %454 = vmatpush.msra.mxu0 0.0
        %455 = vmatpush.msra.mxu0 0.0
        %456 = vmatpush.msra.mxu0 0.0
        %457 = vmatpush.msra.mxu0 0.0
        %458 = vmatpush.msra.mxu0 0.0
        %459 = vmatpush.msra.mxu0 0.0
        %460 = vmatpush.msra.mxu0 0.0
        %461 = vmatpush.msra.mxu0 %v432
        %462 = vmatpush.msra.mxu0 %v431
        %463 = vmatpush.msra.mxu0 %v430
        %464 = vmatpush.msra.mxu0 %v429
        %465 = vmatmul.f32.gmra.mxu0 %v447
        %v466 = vpop.f32.mrf.mxu0
        %v467 = vadd.f32 %v444, %v466
        %468 = vdwg.mxu0
        %v469 = vmax.f32 %v467, 0.0
        %v471 = vperm.slane %v441, 0
        %v474 = vsel %vm376, %v469, 0
        %476 = vmatpush.msra.mxu0 0.0
        %477 = vmatpush.msra.mxu0 0.0
        %478 = vmatpush.msra.mxu0 0.0
        %479 = vmatpush.msra.mxu0 0.0
        %480 = vmatpush.msra.mxu0 0.0
        %481 = vmatpush.msra.mxu0 0.0
        %482 = vmatpush.msra.mxu0 0.0
        %483 = vmatpush.msra.mxu0 0.0
        %484 = vmatpush.msra.mxu0 0.0
        %485 = vmatpush.msra.mxu0 0.0
        %486 = vmatpush.msra.mxu0 0.0
        %487 = vmatpush.msra.mxu0 0.0
        %488 = vmatpush.msra.mxu0 %v437
        %489 = vmatpush.msra.mxu0 %v436
        %490 = vmatpush.msra.mxu0 %v435
        %491 = vmatpush.msra.mxu0 %v434
        %492 = vmatmul.f32.gmra.mxu0 %v474
        %v493 = vpop.f32.mrf.mxu0
        %v494 = vadd.f32 %v471, %v493
        %495 = vdwg.mxu0
        %v496 = vadd.f32 %v427, %v494
        %v497 = vld [vmem:[%s3] sm:$0xff]
        %v498 = vld [vmem:[%s3 + $0x8] sm:$0xff]
        %v499 = vld [vmem:[%s3 + $0x10] sm:$0xff]
        %v500 = vld [vmem:[%s3 + $0x18] sm:$0xff]
        %v501 = vld [vmem:[%s6] sm:$0x1]
        %v503 = vperm.slane %v501, 0
        %v506 = vsel %vm376, %v496, 0
        %508 = vmatpush.msra.mxu0 0.0
        %509 = vmatpush.msra.mxu0 0.0
        %510 = vmatpush.msra.mxu0 0.0
        %511 = vmatpush.msra.mxu0 0.0
        %512 = vmatpush.msra.mxu0 0.0
        %513 = vmatpush.msra.mxu0 0.0
        %514 = vmatpush.msra.mxu0 0.0
        %515 = vmatpush.msra.mxu0 0.0
        %516 = vmatpush.msra.mxu0 0.0
        %517 = vmatpush.msra.mxu0 0.0
        %518 = vmatpush.msra.mxu0 0.0
        %519 = vmatpush.msra.mxu0 0.0
        %520 = vmatpush.msra.mxu0 %v500
        %521 = vmatpush.msra.mxu0 %v499
        %522 = vmatpush.msra.mxu0 %v498
        %523 = vmatpush.msra.mxu0 %v497
        %524 = vmatmul.f32.gmra.mxu0 %v506
        %v525 = vpop.f32.mrf.mxu0
        %v526 = vadd.f32 %v503, %v525
        %527 = vdwg.mxu0
        %v528 = vld [vmem:[%s4] sm:$0xff]
        %v529 = vld [vmem:[%s4 + $0x8] sm:$0xff]
        %v530 = vld [vmem:[%s4 + $0x10] sm:$0xff]
        %v531 = vld [vmem:[%s4 + $0x18] sm:$0xff]
        %s532 = scalar_lea.vmem %s6, 1
        %v533 = vld [vmem:[%s532] sm:$0x1]
        %v535 = vperm.slane %v533, 0
        %537 = vmatpush.msra.mxu0 0.0
        %538 = vmatpush.msra.mxu0 0.0
        %539 = vmatpush.msra.mxu0 0.0
        %540 = vmatpush.msra.mxu0 0.0
        %541 = vmatpush.msra.mxu0 0.0
        %542 = vmatpush.msra.mxu0 0.0
        %543 = vmatpush.msra.mxu0 0.0
        %544 = vmatpush.msra.mxu0 0.0
        %545 = vmatpush.msra.mxu0 0.0
        %546 = vmatpush.msra.mxu0 0.0
        %547 = vmatpush.msra.mxu0 0.0
        %548 = vmatpush.msra.mxu0 0.0
        %549 = vmatpush.msra.mxu0 %v531
        %550 = vmatpush.msra.mxu0 %v530
        %551 = vmatpush.msra.mxu0 %v529
        %552 = vmatpush.msra.mxu0 %v528
        %553 = vmatmul.f32.gmra.mxu0 %v506
        %v554 = vpop.f32.mrf.mxu0
        %v555 = vadd.f32 %v535, %v554
        %556 = vdwg.mxu0
        %vm557 = vcmp.gt.f32.partialorder %v526, 20.0
        %v558 = vmin.f32 %v526, 20.0
        %v559 = vmul.f32 %v558, 1.442695
        %v560 = vpow.pop %v559
        %v561 = vadd.f32 %v560, 1.0
        %v562 = vlog2.pop %v561
        %v563 = vmul.f32 %v562, 0.6931472
        %v564 = vsel %vm557, %v526, %v563
        %v565 = vadd.f32 %v564, 0.001
        %v566 = vmul.f32 %v565, %v329
        %v567 = vadd.f32 %v566, %v555
        %568 = vst.msk [vmem:[%s324] sm:$0xff] %vm335, %v567
        %v569 = vlog2.pop %v565
        %v570 = vmul.f32 %v569, 0.6931472
        %v571 = vsel %vm335, %v570, 0.0
        %572 = vadd.xlane.f32.xlu0 %v571
        %v573 = vpop.xlane.xlu0 %572
        %vm574 = vcmask 7168
        %575 = vst.msk [vmem:[%s328] sm:$0xff] %vm574, %v573
        %p576 = scmp.lt.s32.totalorder %s21, 1
        %s577 = scalar_select %p576, %s21, 1
        %s578 = smul.addr %s577, 8
        %s579 = scalar_lea.vmem %s7, %s578
        %p580 = scmp.lt.s32.totalorder %s21, 1
        %s581 = scalar_select %p580, %s21, 1
        %s582 = smul.addr %s581, 8
        %s583 = scalar_lea.vmem %s8, %s582
        // Predicated region
        $region53: #{tpu_custom_call.1} parent=47 // pred_check
          %p584 = pneg %p191
        $region54: #{tpu_custom_call.1} parent=47 // pred_check_branch
          %586 = sbr.rel (%p584) target = $region56
        $region55: #{tpu_custom_call.1} parent=47 // pred_region
          _
        $region56: #{tpu_custom_call.1} parent=47 // pred_fallthru
          _
        // Predicated region
        $region57: #{tpu_custom_call.1} parent=47 // pred_check
          %p587 = pneg %p217
        $region58: #{tpu_custom_call.1} parent=47 // pred_check_branch
          %589 = sbr.rel (%p587) target = $region60
        $region59: #{tpu_custom_call.1} parent=47 // pred_region
          _
        $region60: #{tpu_custom_call.1} parent=47 // pred_fallthru
          _
      $region48: #{tpu_custom_call.1} parent=5 // pred_fallthru
        _
      %p590 = scmp.le.s32.totalorder 2, %s16
      // Predicated region
      $region61: #{tpu_custom_call.1} parent=5 // pred_check
        %p591 = pneg %p590
      $region62: #{tpu_custom_call.1} parent=5 // pred_check_branch
        %593 = sbr.rel (%p591) target = $region64
      $region63: #{tpu_custom_call.1} parent=5 // pred_region
        %s594 = ssub.s32 %s16, 2
        // Predicated region
        $region65: #{tpu_custom_call.1} parent=63 // pred_check
          %p595 = pneg %p197
        $region66: #{tpu_custom_call.1} parent=63 // pred_check_branch
          %597 = sbr.rel (%p595) target = $region68
        $region67: #{tpu_custom_call.1} parent=63 // pred_region
          %p598 = scmp.lt.s32.totalorder %s22, 1
          %s599 = scalar_select %p598, %s22, 1
          %s600 = smul.addr %s599, 8
          %s601 = scalar_lea.vmem %s7, %s600
        $region68: #{tpu_custom_call.1} parent=63 // pred_fallthru
          _
        // Predicated region
        $region69: #{tpu_custom_call.1} parent=63 // pred_check
          %p602 = pneg %p223
        $region70: #{tpu_custom_call.1} parent=63 // pred_check_branch
          %604 = sbr.rel (%p602) target = $region72
        $region71: #{tpu_custom_call.1} parent=63 // pred_region
          %p605 = scmp.lt.s32.totalorder %s22, 1
          %s606 = scalar_select %p605, %s22, 1
          %s607 = smul.addr %s606, 8
          %s608 = scalar_lea.vmem %s8, %s607
        $region72: #{tpu_custom_call.1} parent=63 // pred_fallthru
          _
      $region64: #{tpu_custom_call.1} parent=5 // pred_fallthru
        _
    $region6: #{tpu_custom_call.1} parent=1 // loop_footer
      %s20 = sadd.s32 1, %s16
    $region7: #{tpu_custom_call.1} parent=1 // loop_footer_branch
      %15 = sbr.rel target = $region3
    $region8: #{tpu_custom_call.1} parent=1 // loop_exit
      _
    %609 = vsyncpa [#allocation3], 1
    %s610 = scalar_lea.sflag [#allocation3], 1
    %611 = vsyncpa %s610, 1

</llo_original>
